<compile_context>
chip_gen: v5e
topology: v5e:2x2
jax: 0.10.0
libtpu: 0.0.40
codegen_flags: <defaults>
</compile_context>

<pallas_src>
import functools

import jax
import jax.numpy as jnp
from jax.experimental import pallas as pl
from jax.experimental.pallas import tpu as pltpu


# ----------------------------- kernel body ---------------------------------

def coattention_kernel(v_ref, q_ref, wv_ref, bv_ref, wq_ref, bq_ref,
                       v_out_ref, q_out_ref, *, use_bf16_acts):
    bt, Nv, Dv = v_ref.shape
    _, Nq, Dq = q_ref.shape
    Hp = wv_ref.shape[1]

    v = v_ref[...]                      # (bt, Nv, Dv) f32 (kept for residual)
    q = q_ref[...]                      # (bt, Nq, Dq) f32

    # ---- FCNet: Linear (+bias) + ReLU (dropout = identity at inference) ----
    # Fold batch into the matmul M-dim. Activations stay f32 for small M
    # (cast + sublane repack would cost more than the MXU passes it saves);
    # for large batch tiles they go bf16 with f32 MXU accumulation.
    v2 = v.reshape(bt * Nv, Dv)
    q2 = q.reshape(bt * Nq, Dq)
    if use_bf16_acts:
        v2 = v2.astype(jnp.bfloat16)
        q2 = q2.astype(jnp.bfloat16)
    v_fc = jnp.maximum(
        jnp.dot(v2, wv_ref[...], preferred_element_type=jnp.float32)
        + bv_ref[...], 0.0).reshape(bt, Nv, Hp)              # (bt, Nv, Hp) f32
    q_fc = jnp.maximum(
        jnp.dot(q2, wq_ref[...], preferred_element_type=jnp.float32)
        + bq_ref[...], 0.0).reshape(bt, Nq, Hp)              # (bt, Nq, Hp) f32

    # ---- Only col 0 / row 0 of the affinity matrix are ever used ----
    # col0[b, i] = v_fc[b, i] . q_fc[b, 0]   (column 0 of aff)
    # row0[b, j] = q_fc[b, j] . v_fc[b, 0]   (row 0 of aff)
    # N=1 output column => degenerate MXU matmul; do it as a VPU lane-wise
    # multiply + XLU lane reduction instead (those slots are otherwise idle).
    col0 = jnp.sum(v_fc * q_fc[:, 0:1, :], axis=-1, keepdims=True)   # (bt,Nv,1)
    row0 = jnp.sum(q_fc * v_fc[:, 0:1, :], axis=-1, keepdims=True)   # (bt,Nq,1)

    # ---- softmax over the token axis (axis=1), max-stabilized ----
    # For token counts in the demo range (<=128) the (bt, N, 1) layout is a
    # wash vs lane-major logits; revisit if Nv/Nq grow into the hundreds.
    col0 = col0 - jnp.max(col0, axis=1, keepdims=True)
    e_v = jnp.exp(col0)
    v_att = e_v * pl.reciprocal(jnp.sum(e_v, axis=1, keepdims=True),
                                approx=True)                 # (bt, Nv, 1)

    row0 = row0 - jnp.max(row0, axis=1, keepdims=True)
    e_q = jnp.exp(row0)
    q_att = e_q * pl.reciprocal(jnp.sum(e_q, axis=1, keepdims=True),
                                approx=True)                 # (bt, Nq, 1)

    # ---- fused residual re-weighting: v*att + v == v*(1 + att) ----
    v_out_ref[...] = (v * (1.0 + v_att)).astype(v_out_ref.dtype)
    q_out_ref[...] = (q * (1.0 + q_att)).astype(q_out_ref.dtype)


# --------------------------- tiling heuristics ------------------------------

def _device_vmem_plan():
    """(vmem_budget_bytes for tiling, vmem hard cap, tensorcores per chip)."""
    kind = ""
    try:
        kind = jax.devices()[0].device_kind.lower()
    except Exception:
        pass
    if "v7" in kind:
        # v7x: 64 MiB physical VMEM per TC, 2 TCs share the grid.
        return 32 << 20, 56 << 20, 2
    if "v5e" in kind or "v5 lite" in kind or "v5lite" in kind:
        # v5e: 128 MiB physical, single TC, tight scoped default.
        return 64 << 20, 100 << 20, 1
    # v6e / unknown: 128 MiB physical, single TC.
    return 64 << 20, 100 << 20, 1


def _per_batch_vmem_bytes(Nv, Dv, Nq, Dq, Hp):
    """Conservative VMEM bytes per batch element folded into one grid step."""
    io = 4 * (Nv * Dv + Nq * Dq)          # one f32 copy of v + q
    dbuf_in = 2 * io                      # double-buffered input blocks
    dbuf_out = 2 * io                     # double-buffered output blocks
    interm = 4 * (Nv + Nq) * Hp           # f32 FC activations
    interm += 2 * (Nv * Dv + Nq * Dq)     # possible bf16 activation copies
    return dbuf_in + dbuf_out + interm


def _weights_vmem_bytes(Dv, Dq, Hp):
    # double-buffered weight + bias blocks (worst case: f32 weights)
    return 2 * ((Dv + Dq) * Hp * 4 + 2 * Hp * 4)


# ------------------------------- wrapper ------------------------------------

def coattention(v, q, wv_t, bv, wq_t, bq, *, batch_tile=None):
    """v: (B, Nv, Dv), q: (B, Nq, Dq); wv_t: (Dv, H); bv: (1, H); same for q."""
    B, Nv, Dv = v.shape
    _, Nq, Dq = q.shape
    H = wv_t.shape[1]

    # Zero-pad the hidden dim to a full 128-lane tile: padded columns produce
    # ReLU(0 + 0) = 0 activations and contribute nothing to the affinity dots.
    Hp = pl.cdiv(H, 128) * 128
    if Hp != H:
        wv_t = jnp.pad(wv_t, ((0, 0), (0, Hp - H)))
        wq_t = jnp.pad(wq_t, ((0, 0), (0, Hp - H)))
        bv = jnp.pad(bv, ((0, 0), (0, Hp - H)))
        bq = jnp.pad(bq, ((0, 0), (0, Hp - H)))

    # ---- VMEM-aware, generation-aware batch tiling ----
    budget, vmem_cap, n_cores = _device_vmem_plan()
    per_bt = _per_batch_vmem_bytes(Nv, Dv, Nq, Dq, Hp)
    w_bytes = _weights_vmem_bytes(Dv, Dq, Hp)
    max_bt = max(1, (budget - w_bytes) // per_bt)

    if batch_tile is None:
        if n_cores >= 2 and B >= 2:
            # v7x: keep >= 2 steps and an even step count so both TCs get
            # equal "parallel" work.
            steps = max(2, pl.cdiv(B, max_bt))
            if steps % 2:
                steps += 1
        else:
            # single-TC chips: fewest, largest steps that fit VMEM.
            steps = pl.cdiv(B, max_bt)
        bt = pl.cdiv(B, steps)
    else:
        bt = batch_tile
        steps = pl.cdiv(B, bt)

    # Zero-pad the batch so the tile divides it (cheaper than many tiny steps
    # for prime B); padded rows produce zeros and are sliced off below.
    B_pad = bt * steps
    if B_pad != B:
        v = jnp.pad(v, ((0, B_pad - B), (0, 0), (0, 0)))
        q = jnp.pad(q, ((0, B_pad - B), (0, 0), (0, 0)))

    # bf16 activations only pay off when the per-step matmul M-dim is large.
    use_bf16_acts = (bt * Nv >= 512) and (bt * Nq >= 512)
    w_dtype = jnp.bfloat16 if use_bf16_acts else jnp.float32
    wv_t = wv_t.astype(w_dtype)
    wq_t = wq_t.astype(w_dtype)
    bv = bv.astype(jnp.float32)
    bq = bq.astype(jnp.float32)

    est_step_bytes = per_bt * bt + w_bytes
    vmem_limit = int(min(vmem_cap, max(2 * est_step_bytes, 32 << 20)))

    flops = (2 * B_pad * (Nv * Dv + Nq * Dq) * Hp        # FC matmuls
             + 2 * B_pad * (Nv + Nq) * Hp                # affinity dots
             + 4 * B_pad * (Nv * Dv + Nq * Dq))          # residual re-weighting
    bytes_accessed = (2 * 4 * B_pad * (Nv * Dv + Nq * Dq)
                      + (Dv + Dq) * Hp * (2 if use_bf16_acts else 4)
                      + 2 * Hp * 4)
    transcendentals = B_pad * (Nv + Nq)

    kernel = functools.partial(coattention_kernel, use_bf16_acts=use_bf16_acts)

    v_out, q_out = pl.pallas_call(
        kernel,
        out_shape=(jax.ShapeDtypeStruct((B_pad, Nv, Dv), v.dtype),
                   jax.ShapeDtypeStruct((B_pad, Nq, Dq), q.dtype)),
        grid_spec=pltpu.PrefetchScalarGridSpec(
            num_scalar_prefetch=0,
            grid=(steps,),
            in_specs=[
                pl.BlockSpec((bt, Nv, Dv), lambda b: (b, 0, 0)),
                pl.BlockSpec((bt, Nq, Dq), lambda b: (b, 0, 0)),
                pl.BlockSpec((Dv, Hp), lambda b: (0, 0)),
                pl.BlockSpec((1, Hp), lambda b: (0, 0)),
                pl.BlockSpec((Dq, Hp), lambda b: (0, 0)),
                pl.BlockSpec((1, Hp), lambda b: (0, 0)),
            ],
            out_specs=[
                pl.BlockSpec((bt, Nv, Dv), lambda b: (b, 0, 0)),
                pl.BlockSpec((bt, Nq, Dq), lambda b: (b, 0, 0)),
            ]),
        compiler_params=pltpu.CompilerParams(
            dimension_semantics=("parallel",),
            vmem_limit_bytes=vmem_limit),
        cost_estimate=pl.CostEstimate(
            flops=int(flops),
            transcendentals=int(transcendentals),
            bytes_accessed=int(bytes_accessed)),
    )(v, q, wv_t, bv, wq_t, bq)

    if B_pad != B:
        v_out = v_out[:B]
        q_out = q_out[:B]
    return v_out, q_out


# ------------------------------ reference -----------------------------------

def coattention_reference(v, q, wv_t, bv, wq_t, bq):
    """Pure-JAX reference mirroring the PyTorch forward."""
    v_fc = jax.nn.relu(jnp.einsum('bnd,dh->bnh', v, wv_t) + bv)
    q_fc = jax.nn.relu(jnp.einsum('bnd,dh->bnh', q, wq_t) + bq)
    aff = jnp.einsum('bvh,bqh->bvq', v_fc, q_fc)
    v_att = jax.nn.softmax(aff, axis=1)[:, :, 0][..., None]
    q_att = jax.nn.softmax(aff, axis=2)[:, 0, :][..., None]
    return v * v_att + v, q * q_att + q


if __name__ == "__main__":
    B, Nv, Nq = 2, 16, 8
    v_dim, q_dim, hid_dim = 32, 48, 32

    key = jax.random.PRNGKey(0)
    k_v, k_q, k_wv, k_bv, k_wq, k_bq = jax.random.split(key, 6)

    v = jax.random.normal(k_v, (B, Nv, v_dim), dtype=jnp.float32)
    q = jax.random.normal(k_q, (B, Nq, q_dim), dtype=jnp.float32)

    # Deterministic "weights" (weight_norm Linear at init == plain Linear).
    # Stored pre-transposed as (in_dim, hid_dim) so the kernel does x @ W.
    wv_t = 0.1 * jax.random.normal(k_wv, (v_dim, hid_dim), dtype=jnp.float32)
    bv = 0.1 * jax.random.normal(k_bv, (1, hid_dim), dtype=jnp.float32)
    wq_t = 0.1 * jax.random.normal(k_wq, (q_dim, hid_dim), dtype=jnp.float32)
    bq = 0.1 * jax.random.normal(k_bq, (1, hid_dim), dtype=jnp.float32)

    v_attend, q_attend = jax.block_until_ready(
        coattention(v, q, wv_t, bv, wq_t, bq))

    v_ref, q_ref = coattention_reference(v, q, wv_t, bv, wq_t, bq)

    assert v_attend.shape == (B, Nv, v_dim)
    assert q_attend.shape == (B, Nq, q_dim)
    assert jnp.allclose(v_attend, v_ref, atol=2e-2, rtol=2e-2)
    assert jnp.allclose(q_attend, q_ref, atol=2e-2, rtol=2e-2)

    print("KERNEL_OK")
</pallas_src>

<mosaic_0001>
module attributes {stable_mosaic.version = 11 : i64} {
  func.func @coattention_kernel(%arg0: i32, %arg1: memref<2x16x32xf32, #tpu.memory_space<vmem>>, %arg2: memref<2x8x48xf32, #tpu.memory_space<vmem>>, %arg3: memref<32x128xf32, #tpu.memory_space<vmem>>, %arg4: memref<1x128xf32, #tpu.memory_space<vmem>>, %arg5: memref<48x128xf32, #tpu.memory_space<vmem>>, %arg6: memref<1x128xf32, #tpu.memory_space<vmem>>, %arg7: memref<2x16x32xf32, #tpu.memory_space<vmem>>, %arg8: memref<2x8x48xf32, #tpu.memory_space<vmem>>) attributes {dimension_semantics = [#tpu.dimension_semantics<parallel>], iteration_bounds = array<i64: 1>, scalar_prefetch = 0 : i64, scratch_operands = 0 : i64, tpu.core_type = #tpu.core_type<tc>, window_params = [{transform_indices = @transform_0, window_bounds = array<i64: 2, 16, 32>}, {transform_indices = @transform_1, window_bounds = array<i64: 2, 8, 48>}, {pipeline_mode = #tpu.pipeline_mode<synchronous>, transform_indices = @transform_2, window_bounds = array<i64: 32, 128>}, {pipeline_mode = #tpu.pipeline_mode<synchronous>, transform_indices = @transform_3, window_bounds = array<i64: 1, 128>}, {pipeline_mode = #tpu.pipeline_mode<synchronous>, transform_indices = @transform_4, window_bounds = array<i64: 48, 128>}, {pipeline_mode = #tpu.pipeline_mode<synchronous>, transform_indices = @transform_5, window_bounds = array<i64: 1, 128>}, {transform_indices = @transform_6, window_bounds = array<i64: 2, 16, 32>}, {transform_indices = @transform_7, window_bounds = array<i64: 2, 8, 48>}]} {
    %c0 = arith.constant 0 : index
    %c0_0 = arith.constant 0 : index
    %c0_1 = arith.constant 0 : index
    %0 = vector.load %arg1[%c0, %c0_0, %c0_1] : memref<2x16x32xf32, #tpu.memory_space<vmem>>, vector<2x16x32xf32>
    %c0_2 = arith.constant 0 : index
    %c0_3 = arith.constant 0 : index
    %c0_4 = arith.constant 0 : index
    %1 = vector.load %arg2[%c0_2, %c0_3, %c0_4] : memref<2x8x48xf32, #tpu.memory_space<vmem>>, vector<2x8x48xf32>
    %2 = vector.shape_cast %0 : vector<2x16x32xf32> to vector<32x32xf32>
    %3 = vector.shape_cast %1 : vector<2x8x48xf32> to vector<16x48xf32>
    %c0_5 = arith.constant 0 : index
    %c0_6 = arith.constant 0 : index
    %4 = vector.load %arg3[%c0_5, %c0_6] : memref<32x128xf32, #tpu.memory_space<vmem>>, vector<32x128xf32>
    %cst = arith.constant dense<0.000000e+00> : vector<32x128xf32>
    %5 = tpu.matmul %2, %4, %cst {dimension_numbers = #tpu.dot_dimension_numbers<[1], [0], [0], [1], [0, 0, 1, 1], [], []>} : vector<32x32xf32>, vector<32x128xf32>, vector<32x128xf32> -> vector<32x128xf32>
    %c0_7 = arith.constant 0 : index
    %c0_8 = arith.constant 0 : index
    %6 = vector.load %arg4[%c0_7, %c0_8] : memref<1x128xf32, #tpu.memory_space<vmem>>, vector<1x128xf32>
    %7 = vector.broadcast %6 : vector<1x128xf32> to vector<32x128xf32>
    %8 = arith.addf %5, %7 : vector<32x128xf32>
    %cst_9 = arith.constant 0.000000e+00 : f32
    %9 = vector.broadcast %cst_9 : f32 to vector<32x128xf32>
    %10 = arith.maximumf %8, %9 : vector<32x128xf32>
    %11 = vector.shape_cast %10 : vector<32x128xf32> to vector<2x16x128xf32>
    %c0_10 = arith.constant 0 : index
    %c0_11 = arith.constant 0 : index
    %12 = vector.load %arg5[%c0_10, %c0_11] : memref<48x128xf32, #tpu.memory_space<vmem>>, vector<48x128xf32>
    %cst_12 = arith.constant dense<0.000000e+00> : vector<16x128xf32>
    %13 = tpu.matmul %3, %12, %cst_12 {dimension_numbers = #tpu.dot_dimension_numbers<[1], [0], [0], [1], [0, 0, 1, 1], [], []>} : vector<16x48xf32>, vector<48x128xf32>, vector<16x128xf32> -> vector<16x128xf32>
    %c0_13 = arith.constant 0 : index
    %c0_14 = arith.constant 0 : index
    %14 = vector.load %arg6[%c0_13, %c0_14] : memref<1x128xf32, #tpu.memory_space<vmem>>, vector<1x128xf32>
    %15 = vector.broadcast %14 : vector<1x128xf32> to vector<16x128xf32>
    %16 = arith.addf %13, %15 : vector<16x128xf32>
    %cst_15 = arith.constant 0.000000e+00 : f32
    %17 = vector.broadcast %cst_15 : f32 to vector<16x128xf32>
    %18 = arith.maximumf %16, %17 : vector<16x128xf32>
    %19 = vector.shape_cast %18 : vector<16x128xf32> to vector<2x8x128xf32>
    %20 = vector.extract_strided_slice %19 {offsets = [0, 0, 0], sizes = [2, 1, 128], strides = [1, 1, 1]} : vector<2x8x128xf32> to vector<2x1x128xf32>
    %21 = vector.broadcast %20 : vector<2x1x128xf32> to vector<2x16x128xf32>
    %22 = arith.mulf %11, %21 : vector<2x16x128xf32>
    %cst_16 = arith.constant dense<0.000000e+00> : vector<2x16xf32>
    %23 = vector.multi_reduction <add>, %22, %cst_16 [2] : vector<2x16x128xf32> to vector<2x16xf32>
    %24 = vector.shape_cast %23 : vector<2x16xf32> to vector<2x16x1xf32>
    %25 = vector.extract_strided_slice %11 {offsets = [0, 0, 0], sizes = [2, 1, 128], strides = [1, 1, 1]} : vector<2x16x128xf32> to vector<2x1x128xf32>
    %26 = vector.broadcast %25 : vector<2x1x128xf32> to vector<2x8x128xf32>
    %27 = arith.mulf %19, %26 : vector<2x8x128xf32>
    %cst_17 = arith.constant dense<0.000000e+00> : vector<2x8xf32>
    %28 = vector.multi_reduction <add>, %27, %cst_17 [2] : vector<2x8x128xf32> to vector<2x8xf32>
    %29 = vector.shape_cast %28 : vector<2x8xf32> to vector<2x8x1xf32>
    %cst_18 = arith.constant dense<0xFF800000> : vector<2x1xf32>
    %30 = vector.multi_reduction <maximumf>, %24, %cst_18 [1] : vector<2x16x1xf32> to vector<2x1xf32>
    %31 = vector.shape_cast %30 : vector<2x1xf32> to vector<2x1x1xf32>
    %32 = vector.broadcast %31 : vector<2x1x1xf32> to vector<2x16x1xf32>
    %33 = arith.subf %24, %32 : vector<2x16x1xf32>
    %34 = math.exp %33 : vector<2x16x1xf32>
    %cst_19 = arith.constant dense<0.000000e+00> : vector<2x1xf32>
    %35 = vector.multi_reduction <add>, %34, %cst_19 [1] : vector<2x16x1xf32> to vector<2x1xf32>
    %36 = vector.shape_cast %35 : vector<2x1xf32> to vector<2x1x1xf32>
    %37 = tpu.reciprocal %36 {approx = true} : vector<2x1x1xf32> -> vector<2x1x1xf32>
    %38 = vector.broadcast %37 : vector<2x1x1xf32> to vector<2x16x1xf32>
    %39 = arith.mulf %34, %38 : vector<2x16x1xf32>
    %cst_20 = arith.constant dense<0xFF800000> : vector<2x1xf32>
    %40 = vector.multi_reduction <maximumf>, %29, %cst_20 [1] : vector<2x8x1xf32> to vector<2x1xf32>
    %41 = vector.shape_cast %40 : vector<2x1xf32> to vector<2x1x1xf32>
    %42 = vector.broadcast %41 : vector<2x1x1xf32> to vector<2x8x1xf32>
    %43 = arith.subf %29, %42 : vector<2x8x1xf32>
    %44 = math.exp %43 : vector<2x8x1xf32>
    %cst_21 = arith.constant dense<0.000000e+00> : vector<2x1xf32>
    %45 = vector.multi_reduction <add>, %44, %cst_21 [1] : vector<2x8x1xf32> to vector<2x1xf32>
    %46 = vector.shape_cast %45 : vector<2x1xf32> to vector<2x1x1xf32>
    %47 = tpu.reciprocal %46 {approx = true} : vector<2x1x1xf32> -> vector<2x1x1xf32>
    %48 = vector.broadcast %47 : vector<2x1x1xf32> to vector<2x8x1xf32>
    %49 = arith.mulf %44, %48 : vector<2x8x1xf32>
    %cst_22 = arith.constant 1.000000e+00 : f32
    %50 = vector.broadcast %cst_22 : f32 to vector<2x16x1xf32>
    %51 = arith.addf %50, %39 : vector<2x16x1xf32>
    %52 = vector.broadcast %51 : vector<2x16x1xf32> to vector<2x16x32xf32>
    %53 = arith.mulf %0, %52 : vector<2x16x32xf32>
    %c0_23 = arith.constant 0 : index
    %c0_24 = arith.constant 0 : index
    %c0_25 = arith.constant 0 : index
    %54 = vector.load %arg7[%c0_23, %c0_24, %c0_25] : memref<2x16x32xf32, #tpu.memory_space<vmem>>, vector<2x16x32xf32>
    tpu.vector_store %arg7[%c0_23, %c0_24, %c0_25], %53 {strides = array<i32>} : memref<2x16x32xf32, #tpu.memory_space<vmem>>, vector<2x16x32xf32>,
    %cst_26 = arith.constant 1.000000e+00 : f32
    %55 = vector.broadcast %cst_26 : f32 to vector<2x8x1xf32>
    %56 = arith.addf %55, %49 : vector<2x8x1xf32>
    %57 = vector.broadcast %56 : vector<2x8x1xf32> to vector<2x8x48xf32>
    %58 = arith.mulf %1, %57 : vector<2x8x48xf32>
    %c0_27 = arith.constant 0 : index
    %c0_28 = arith.constant 0 : index
    %c0_29 = arith.constant 0 : index
    %59 = vector.load %arg8[%c0_27, %c0_28, %c0_29] : memref<2x8x48xf32, #tpu.memory_space<vmem>>, vector<2x8x48xf32>
    tpu.vector_store %arg8[%c0_27, %c0_28, %c0_29], %58 {strides = array<i32>} : memref<2x8x48xf32, #tpu.memory_space<vmem>>, vector<2x8x48xf32>,
    return
  }
  func.func @transform_0(%arg0: i32) -> (i32, i32, i32) {
    %c0_i32 = arith.constant 0 : i32
    %c0_i32_0 = arith.constant 0 : i32
    %c0_i32_1 = arith.constant 0 : i32
    return %arg0, %c0_i32, %c0_i32_0 : i32, i32, i32
  }
  func.func @transform_1(%arg0: i32) -> (i32, i32, i32) {
    %c0_i32 = arith.constant 0 : i32
    %c0_i32_0 = arith.constant 0 : i32
    %c0_i32_1 = arith.constant 0 : i32
    return %arg0, %c0_i32, %c0_i32_0 : i32, i32, i32
  }
  func.func @transform_2(%arg0: i32) -> (i32, i32) {
    %c0_i32 = arith.constant 0 : i32
    %c0_i32_0 = arith.constant 0 : i32
    %c0_i32_1 = arith.constant 0 : i32
    return %c0_i32, %c0_i32_0 : i32, i32
  }
  func.func @transform_3(%arg0: i32) -> (i32, i32) {
    %c0_i32 = arith.constant 0 : i32
    %c0_i32_0 = arith.constant 0 : i32
    %c0_i32_1 = arith.constant 0 : i32
    return %c0_i32, %c0_i32_0 : i32, i32
  }
  func.func @transform_4(%arg0: i32) -> (i32, i32) {
    %c0_i32 = arith.constant 0 : i32
    %c0_i32_0 = arith.constant 0 : i32
    %c0_i32_1 = arith.constant 0 : i32
    return %c0_i32, %c0_i32_0 : i32, i32
  }
  func.func @transform_5(%arg0: i32) -> (i32, i32) {
    %c0_i32 = arith.constant 0 : i32
    %c0_i32_0 = arith.constant 0 : i32
    %c0_i32_1 = arith.constant 0 : i32
    return %c0_i32, %c0_i32_0 : i32, i32
  }
  func.func @transform_6(%arg0: i32) -> (i32, i32, i32) {
    %c0_i32 = arith.constant 0 : i32
    %c0_i32_0 = arith.constant 0 : i32
    %c0_i32_1 = arith.constant 0 : i32
    return %arg0, %c0_i32, %c0_i32_0 : i32, i32, i32
  }
  func.func @transform_7(%arg0: i32) -> (i32, i32, i32) {
    %c0_i32 = arith.constant 0 : i32
    %c0_i32_0 = arith.constant 0 : i32
    %c0_i32_1 = arith.constant 0 : i32
    return %arg0, %c0_i32, %c0_i32_0 : i32, i32, i32
  }
}

</mosaic_0001>

<llo_original>
// kernel: tpu_custom_call.1
$region0: #{tpu_custom_call.1}
  #allocation0 [shape = 'u32[]', space=smem, size = 0x4, offset = 0x4, fixed_abs, tag = 'smem constant byte address 0x4 - core index']
  #allocation1 [shape = 'u32[72,128]{1,0:T(1,128)}', space=vmem, size = 0x9000, scoped, tag = 'internal scratch']
  %s0 = inlined_call_operand.hbm [shape: f32[2,16,32], index: 0, kind: input, shape index: {}]
  %s1 = inlined_call_operand.hbm [shape: f32[2,8,48], index: 1, kind: input, shape index: {}]
  %s2 = inlined_call_operand.hbm [shape: f32[32,128], index: 2, kind: input, shape index: {}]
  %s3 = inlined_call_operand.vmem [shape: f32[1,128], index: 3, kind: input, shape index: {}]
  %s4 = inlined_call_operand.hbm [shape: f32[48,128], index: 4, kind: input, shape index: {}]
  %s5 = inlined_call_operand.vmem [shape: f32[1,128], index: 5, kind: input, shape index: {}]
  %s6 = inlined_call_operand.hbm [shape: f32[2,16,32], index: 6, kind: output, shape index: {0}]
  %s7 = inlined_call_operand.hbm [shape: f32[2,8,48], index: 7, kind: output, shape index: {1}]
  %8 = xla_tuple %s6, %s7
  %s9 = sld [smem:[#allocation0]]
  $region58: #{tpu_custom_call.1} parent=0
    _
  %s11 = ssub.s32 1, %s9
  %s12 = scalar_select 0, %s11, %s9
  $region1: #{tpu_custom_call.1} parent=0
    #allocation2 [shape = 'u8[16384]{0}', space=vmem, size = 0x4000, scoped, tag = 'input window, operand 0, single buffered']
    #allocation3 [shape = 's32[1]{0}', space=sflag, size = 0x4, scoped, tag = 'scoped memory for tpu_custom_call.1']
    #allocation4 [shape = 's32[1]{0}', space=sflag, size = 0x4, scoped, tag = 'scoped memory for tpu_custom_call.1']
    #allocation5 [shape = 'u8[8192]{0}', space=vmem, size = 0x2000, scoped, tag = 'input window, operand 1, single buffered']
    #allocation6 [shape = 's32[1]{0}', space=sflag, size = 0x4, scoped, tag = 'scoped memory for tpu_custom_call.1']
    #allocation7 [shape = 'u8[16384]{0}', space=vmem, size = 0x4000, scoped, tag = 'input window, operand 2, single buffered']
    #allocation8 [shape = 'u8[24576]{0}', space=vmem, size = 0x6000, scoped, tag = 'input window, operand 4, single buffered']
    #allocation9 [shape = 's32[1]{0}', space=sflag, size = 0x4, scoped, tag = 'scoped memory for tpu_custom_call.1']
    #allocation10 [shape = 'u8[16384]{0}', space=vmem, size = 0x4000, scoped, tag = 'output window, operand 0, single buffered']
    #allocation11 [shape = 'u8[8192]{0}', space=vmem, size = 0x2000, scoped, tag = 'output window, operand 1, single buffered']
    #allocation12 [shape = 's32[1]{0}', space=sflag, size = 0x4, scoped, tag = 'scoped memory for tpu_custom_call.1']
    %13 = vsyncpa [#allocation3], 0
    %14 = vsyncpa [#allocation6], 0
    %15 = vsyncpa [#allocation9], 0
    %16 = vsyncpa [#allocation4], 0
    %17 = vsyncpa [#allocation12], 0
    // Predicated region
    $region2: #{tpu_custom_call.1} parent=1 // pred_check
      _
    $region3: #{tpu_custom_call.1} parent=1 // pred_check_branch
      %19 = sbr.rel (0) target = $region5
    $region4: #{tpu_custom_call.1} parent=1 // pred_region
      %21 = vsyncadd [#allocation3], 0
      %s22 = sshll.u32 %s0, 4
      %s23 = int_to_ptr.hbm [resolvable:$true] %s22
      %s24 = sshll.u32 [#allocation2], 4
      %s25 = int_to_ptr.vmem [resolvable:$true] %s24
      %30 = dma.hbm_to_vmem [thread:$0]  %s23, 512, %s25, [#allocation3], 128, 128, 8
    $region5: #{tpu_custom_call.1} parent=1 // pred_fallthru
      _
    // Predicated region
    $region6: #{tpu_custom_call.1} parent=1 // pred_check
      _
    $region7: #{tpu_custom_call.1} parent=1 // pred_check_branch
      %32 = sbr.rel (0) target = $region9
    $region8: #{tpu_custom_call.1} parent=1 // pred_region
      %34 = vsyncadd [#allocation6], 0
      %s35 = sshll.u32 %s1, 4
      %s36 = int_to_ptr.hbm [resolvable:$true] %s35
      %s37 = sshll.u32 [#allocation5], 4
      %s38 = int_to_ptr.vmem [resolvable:$true] %s37
      %43 = dma.hbm_to_vmem [thread:$0]  %s36, 256, %s38, [#allocation6], 128, 128, 8
    $region9: #{tpu_custom_call.1} parent=1 // pred_fallthru
      _
    // Predicated region
    $region10: #{tpu_custom_call.1} parent=1 // pred_check
      _
    $region11: #{tpu_custom_call.1} parent=1 // pred_check_branch
      %45 = sbr.rel (0) target = $region13
    $region12: #{tpu_custom_call.1} parent=1 // pred_region
      %47 = vsyncadd [#allocation6], 0
      %s48 = sshll.u32 %s2, 4
      %s49 = int_to_ptr.hbm [resolvable:$true] %s48
      %s50 = sshll.u32 [#allocation7], 4
      %s51 = int_to_ptr.vmem [resolvable:$true] %s50
      %56 = dma.hbm_to_vmem [thread:$0]  %s49, 512, %s51, [#allocation6], 128, 128, 8
    $region13: #{tpu_custom_call.1} parent=1 // pred_fallthru
      _
    // Predicated region
    $region14: #{tpu_custom_call.1} parent=1 // pred_check
      _
    $region15: #{tpu_custom_call.1} parent=1 // pred_check_branch
      %58 = sbr.rel (0) target = $region17
    $region16: #{tpu_custom_call.1} parent=1 // pred_region
      _
    $region17: #{tpu_custom_call.1} parent=1 // pred_fallthru
      _
    // Predicated region
    $region18: #{tpu_custom_call.1} parent=1 // pred_check
      _
    $region19: #{tpu_custom_call.1} parent=1 // pred_check_branch
      %60 = sbr.rel (0) target = $region21
    $region20: #{tpu_custom_call.1} parent=1 // pred_region
      %62 = vsyncadd [#allocation9], 0
      %s63 = sshll.u32 %s4, 4
      %s64 = int_to_ptr.hbm [resolvable:$true] %s63
      %s65 = sshll.u32 [#allocation8], 4
      %s66 = int_to_ptr.vmem [resolvable:$true] %s65
      %71 = dma.hbm_to_vmem [thread:$0]  %s64, 768, %s66, [#allocation9], 128, 128, 8
    $region21: #{tpu_custom_call.1} parent=1 // pred_fallthru
      _
    // Predicated region
    $region22: #{tpu_custom_call.1} parent=1 // pred_check
      _
    $region23: #{tpu_custom_call.1} parent=1 // pred_check_branch
      %73 = sbr.rel (0) target = $region25
    $region24: #{tpu_custom_call.1} parent=1 // pred_region
      _
    $region25: #{tpu_custom_call.1} parent=1 // pred_fallthru
      _
    // Predicated region
    $region26: #{tpu_custom_call.1} parent=1 // pred_check
      _
    $region27: #{tpu_custom_call.1} parent=1 // pred_check_branch
      %75 = sbr.rel (0) target = $region29
    $region28: #{tpu_custom_call.1} parent=1 // pred_region
      %77 = dma.done [#allocation3], 512
    $region29: #{tpu_custom_call.1} parent=1 // pred_fallthru
      _
    // Predicated region
    $region30: #{tpu_custom_call.1} parent=1 // pred_check
      _
    $region31: #{tpu_custom_call.1} parent=1 // pred_check_branch
      %79 = sbr.rel (0) target = $region33
    $region32: #{tpu_custom_call.1} parent=1 // pred_region
      %81 = dma.done [#allocation6], 256
    $region33: #{tpu_custom_call.1} parent=1 // pred_fallthru
      _
    // Predicated region
    $region34: #{tpu_custom_call.1} parent=1 // pred_check
      _
    $region35: #{tpu_custom_call.1} parent=1 // pred_check_branch
      %83 = sbr.rel (0) target = $region37
    $region36: #{tpu_custom_call.1} parent=1 // pred_region
      %85 = dma.done [#allocation6], 512
    $region37: #{tpu_custom_call.1} parent=1 // pred_fallthru
      _
    // Predicated region
    $region38: #{tpu_custom_call.1} parent=1 // pred_check
      _
    $region39: #{tpu_custom_call.1} parent=1 // pred_check_branch
      %87 = sbr.rel (0) target = $region41
    $region40: #{tpu_custom_call.1} parent=1 // pred_region
      %89 = dma.done [#allocation9], 768
    $region41: #{tpu_custom_call.1} parent=1 // pred_fallthru
      _
    %v90 = vld [vmem:[#allocation2] sm:$0xff]
    %v91 = vld [vmem:[#allocation2 + $0x8] sm:$0xff]
    %v92 = vld [vmem:[#allocation2 + $0x10] sm:$0xff]
    %v93 = vld [vmem:[#allocation2 + $0x18] sm:$0xff]
    %v94 = vld [vmem:[#allocation5] sm:$0xff]
    %v95 = vld [vmem:[#allocation5 + $0x8] sm:$0xff]
    %v96 = vld [vmem:[#allocation7] sm:$0xff]
    %v97 = vld [vmem:[#allocation7 + $0x8] sm:$0xff]
    %v98 = vld [vmem:[#allocation7 + $0x10] sm:$0xff]
    %v99 = vld [vmem:[#allocation7 + $0x18] sm:$0xff]
    %v100 = vld [vmem:[%s3] sm:$0x1]
    %v102 = vperm.slane %v100, 0
    %vm104 = vcmask 261120
    %v106 = vsel %vm104, %v90, 0
    %v109 = vsel %vm104, %v91, 0
    %v112 = vsel %vm104, %v92, 0
    %v115 = vsel %vm104, %v93, 0
    %117 = vmatpush.msra.mxu0 0.0
    %118 = vmatpush.msra.mxu0 0.0
    %119 = vmatpush.msra.mxu0 0.0
    %120 = vmatpush.msra.mxu0 0.0
    %121 = vmatpush.msra.mxu0 0.0
    %122 = vmatpush.msra.mxu0 0.0
    %123 = vmatpush.msra.mxu0 0.0
    %124 = vmatpush.msra.mxu0 0.0
    %125 = vmatpush.msra.mxu0 0.0
    %126 = vmatpush.msra.mxu0 0.0
    %127 = vmatpush.msra.mxu0 0.0
    %128 = vmatpush.msra.mxu0 0.0
    %129 = vmatpush.msra.mxu0 %v99
    %130 = vmatpush.msra.mxu0 %v98
    %131 = vmatpush.msra.mxu0 %v97
    %132 = vmatpush.msra.mxu0 %v96
    %133 = vmatmul.f32.gmra.mxu0 %v106
    %v134 = vpop.f32.mrf.mxu0
    %v135 = vadd.f32 %v102, %v134
    %136 = vmatmul.f32.gmra.mxu0 %v109
    %v137 = vpop.f32.mrf.mxu0
    %v138 = vadd.f32 %v102, %v137
    %139 = vmatmul.f32.gmra.mxu0 %v112
    %v140 = vpop.f32.mrf.mxu0
    %v141 = vadd.f32 %v102, %v140
    %142 = vmatmul.f32.gmra.mxu0 %v115
    %v143 = vpop.f32.mrf.mxu0
    %v144 = vadd.f32 %v102, %v143
    %145 = vdwg.mxu0
    %v146 = vmax.f32 %v135, 0.0
    %v147 = vmax.f32 %v138, 0.0
    %v148 = vmax.f32 %v141, 0.0
    %v149 = vmax.f32 %v144, 0.0
    %v150 = vld [vmem:[#allocation8] sm:$0xff]
    %v151 = vld [vmem:[#allocation8 + $0x8] sm:$0xff]
    %v152 = vld [vmem:[#allocation8 + $0x10] sm:$0xff]
    %v153 = vld [vmem:[#allocation8 + $0x18] sm:$0xff]
    %v154 = vld [vmem:[#allocation8 + $0x20] sm:$0xff]
    %v155 = vld [vmem:[#allocation8 + $0x28] sm:$0xff]
    %v156 = vld [vmem:[%s5] sm:$0x1]
    %v158 = vperm.slane %v156, 0
    %vm160 = vcmask 392192
    %v162 = vsel %vm160, %v94, 0
    %v165 = vsel %vm160, %v95, 0
    %167 = vmatpush.msra.mxu0 0.0
    %168 = vmatpush.msra.mxu0 0.0
    %169 = vmatpush.msra.mxu0 0.0
    %170 = vmatpush.msra.mxu0 0.0
    %171 = vmatpush.msra.mxu0 0.0
    %172 = vmatpush.msra.mxu0 0.0
    %173 = vmatpush.msra.mxu0 0.0
    %174 = vmatpush.msra.mxu0 0.0
    %175 = vmatpush.msra.mxu0 0.0
    %176 = vmatpush.msra.mxu0 0.0
    %177 = vmatpush.msra.mxu0 %v155
    %178 = vmatpush.msra.mxu0 %v154
    %179 = vmatpush.msra.mxu0 %v153
    %180 = vmatpush.msra.mxu0 %v152
    %181 = vmatpush.msra.mxu0 %v151
    %182 = vmatpush.msra.mxu0 %v150
    %183 = vmatmul.f32.gmra.mxu0 %v162
    %v184 = vpop.f32.mrf.mxu0
    %v185 = vadd.f32 %v158, %v184
    %186 = vmatmul.f32.gmra.mxu0 %v165
    %v187 = vpop.f32.mrf.mxu0
    %v188 = vadd.f32 %v158, %v187
    %189 = vdwg.mxu0
    %v190 = vmax.f32 %v185, 0.0
    %v191 = vmax.f32 %v188, 0.0
    %v192 = vperm.slane %v190, 0
    %v193 = vperm.slane %v191, 0
    %v194 = vmul.f32 %v146, %v192
    %v195 = vmul.f32 %v147, %v192
    %v196 = vmul.f32 %v148, %v193
    %v197 = vmul.f32 %v149, %v193
    %198 = vadd.xlane.f32.xlu0 %v194
    %v199 = vpop.xlane.xlu0 %198
    %200 = vadd.xlane.f32.xlu0 %v195
    %v201 = vpop.xlane.xlu0 %200
    %202 = vadd.xlane.f32.xlu0 %v196
    %v203 = vpop.xlane.xlu0 %202
    %204 = vadd.xlane.f32.xlu0 %v197
    %v205 = vpop.xlane.xlu0 %204
    %v206 = vperm.slane %v146, 0
    %v207 = vperm.slane %v148, 0
    %v208 = vmul.f32 %v190, %v206
    %v209 = vmul.f32 %v191, %v207
    %210 = vadd.xlane.f32.xlu0 %v208
    %v211 = vpop.xlane.xlu0 %210
    %212 = vadd.xlane.f32.xlu0 %v209
    %v213 = vpop.xlane.xlu0 %212
    %v214 = vmax.f32 %v199, %v201
    %v215 = vrot.slane %v214, 4
    %v216 = vmax.f32 %v214, %v215
    %v217 = vrot.slane %v216, 2
    %v218 = vmax.f32 %v216, %v217
    %v219 = vrot.slane %v218, 1
    %v220 = vmax.f32 %v218, %v219
    %v221 = vmax.f32 %v203, %v205
    %v222 = vrot.slane %v221, 4
    %v223 = vmax.f32 %v221, %v222
    %v224 = vrot.slane %v223, 2
    %v225 = vmax.f32 %v223, %v224
    %v226 = vrot.slane %v225, 1
    %v227 = vmax.f32 %v225, %v226
    %v228 = vsub.f32 %v199, %v220
    %v229 = vsub.f32 %v201, %v220
    %v230 = vsub.f32 %v203, %v227
    %v231 = vsub.f32 %v205, %v227
    %v232 = vmul.f32 %v228, 1.442695
    %v233 = vpow.pop %v232
    %v234 = vmul.f32 %v229, 1.442695
    %v235 = vpow.pop %v234
    %v236 = vmul.f32 %v230, 1.442695
    %v237 = vpow.pop %v236
    %v238 = vmul.f32 %v231, 1.442695
    %v239 = vpow.pop %v238
    %v240 = vadd.f32 %v233, %v235
    %v241 = vrot.slane %v240, 4
    %v242 = vadd.f32 %v240, %v241
    %v243 = vrot.slane %v242, 2
    %v244 = vadd.f32 %v242, %v243
    %v245 = vrot.slane %v244, 1
    %v246 = vadd.f32 %v244, %v245
    %v247 = vadd.f32 %v237, %v239
    %v248 = vrot.slane %v247, 4
    %v249 = vadd.f32 %v247, %v248
    %v250 = vrot.slane %v249, 2
    %v251 = vadd.f32 %v249, %v250
    %v252 = vrot.slane %v251, 1
    %v253 = vadd.f32 %v251, %v252
    %v254 = vrcp.pop %v246
    %v255 = vrcp.pop %v253
    %v256 = vmul.f32 %v233, %v254
    %v257 = vmul.f32 %v235, %v254
    %v258 = vmul.f32 %v237, %v255
    %v259 = vmul.f32 %v239, %v255
    %v260 = vrot.slane %v211, 4
    %v261 = vmax.f32 %v211, %v260
    %v262 = vrot.slane %v261, 2
    %v263 = vmax.f32 %v261, %v262
    %v264 = vrot.slane %v263, 1
    %v265 = vmax.f32 %v263, %v264
    %v266 = vrot.slane %v213, 4
    %v267 = vmax.f32 %v213, %v266
    %v268 = vrot.slane %v267, 2
    %v269 = vmax.f32 %v267, %v268
    %v270 = vrot.slane %v269, 1
    %v271 = vmax.f32 %v269, %v270
    %v272 = vsub.f32 %v211, %v265
    %v273 = vsub.f32 %v213, %v271
    %v274 = vmul.f32 %v272, 1.442695
    %v275 = vpow.pop %v274
    %v276 = vmul.f32 %v273, 1.442695
    %v277 = vpow.pop %v276
    %v278 = vrot.slane %v275, 4
    %v279 = vadd.f32 %v275, %v278
    %v280 = vrot.slane %v279, 2
    %v281 = vadd.f32 %v279, %v280
    %v282 = vrot.slane %v281, 1
    %v283 = vadd.f32 %v281, %v282
    %v284 = vrot.slane %v277, 4
    %v285 = vadd.f32 %v277, %v284
    %v286 = vrot.slane %v285, 2
    %v287 = vadd.f32 %v285, %v286
    %v288 = vrot.slane %v287, 1
    %v289 = vadd.f32 %v287, %v288
    %v290 = vrcp.pop %v283
    %v291 = vrcp.pop %v289
    %v292 = vmul.f32 %v275, %v290
    %v293 = vmul.f32 %v277, %v291
    %v294 = vadd.f32 %v256, 1.0
    %v295 = vadd.f32 %v257, 1.0
    %v296 = vadd.f32 %v258, 1.0
    %v297 = vadd.f32 %v259, 1.0
    %v298 = vmul.f32 %v90, %v294
    %v299 = vmul.f32 %v91, %v295
    %v300 = vmul.f32 %v92, %v296
    %v301 = vmul.f32 %v93, %v297
    %302 = vst.msk [vmem:[#allocation10] sm:$0xff] %vm104, %v298
    %303 = vst.msk [vmem:[#allocation10 + $0x8] sm:$0xff] %vm104, %v299
    %304 = vst.msk [vmem:[#allocation10 + $0x10] sm:$0xff] %vm104, %v300
    %305 = vst.msk [vmem:[#allocation10 + $0x18] sm:$0xff] %vm104, %v301
    %v306 = vadd.f32 %v292, 1.0
    %v307 = vadd.f32 %v293, 1.0
    %v308 = vmul.f32 %v94, %v306
    %v309 = vmul.f32 %v95, %v307
    %310 = vst.msk [vmem:[#allocation11] sm:$0xff] %vm160, %v308
    %311 = vst.msk [vmem:[#allocation11 + $0x8] sm:$0xff] %vm160, %v309
    // Predicated region
    $region42: #{tpu_custom_call.1} parent=1 // pred_check
      _
    $region43: #{tpu_custom_call.1} parent=1 // pred_check_branch
      %313 = sbr.rel (0) target = $region45
    $region44: #{tpu_custom_call.1} parent=1 // pred_region
      %315 = vsyncadd [#allocation4], 0
      %s316 = sshll.u32 [#allocation10], 4
      %s317 = int_to_ptr.vmem [resolvable:$true] %s316
      %s318 = sshll.u32 %s6, 4
      %s319 = int_to_ptr.hbm [resolvable:$true] %s318
      %324 = dma.vmem_to_hbm [thread:$0]  %s317, 512, %s319, [#allocation4], 128, 128, 8
    $region45: #{tpu_custom_call.1} parent=1 // pred_fallthru
      _
    // Predicated region
    $region46: #{tpu_custom_call.1} parent=1 // pred_check
      _
    $region47: #{tpu_custom_call.1} parent=1 // pred_check_branch
      %326 = sbr.rel (0) target = $region49
    $region48: #{tpu_custom_call.1} parent=1 // pred_region
      %328 = vsyncadd [#allocation12], 0
      %s329 = sshll.u32 [#allocation11], 4
      %s330 = int_to_ptr.vmem [resolvable:$true] %s329
      %s331 = sshll.u32 %s7, 4
      %s332 = int_to_ptr.hbm [resolvable:$true] %s331
      %337 = dma.vmem_to_hbm [thread:$0]  %s330, 256, %s332, [#allocation12], 128, 128, 8
    $region49: #{tpu_custom_call.1} parent=1 // pred_fallthru
      _
    // Predicated region
    $region50: #{tpu_custom_call.1} parent=1 // pred_check
      _
    $region51: #{tpu_custom_call.1} parent=1 // pred_check_branch
      %339 = sbr.rel (0) target = $region53
    $region52: #{tpu_custom_call.1} parent=1 // pred_region
      %341 = dma.done [#allocation4], 512
    $region53: #{tpu_custom_call.1} parent=1 // pred_fallthru
      _
    // Predicated region
    $region54: #{tpu_custom_call.1} parent=1 // pred_check
      _
    $region55: #{tpu_custom_call.1} parent=1 // pred_check_branch
      %343 = sbr.rel (0) target = $region57
    $region56: #{tpu_custom_call.1} parent=1 // pred_region
      %345 = dma.done [#allocation12], 256
    $region57: #{tpu_custom_call.1} parent=1 // pred_fallthru
      _
    %346 = vsyncpa [#allocation3], 1
    %347 = vsyncpa [#allocation6], 1
    %348 = vsyncpa [#allocation9], 1
    %349 = vsyncpa [#allocation4], 1
    %350 = vsyncpa [#allocation12], 1

</llo_original>
